<compile_context>
chip_gen: v6e
topology: v6e:2x2x1
jax: 0.10.0
libtpu: 0.0.40
codegen_flags: <defaults>
</compile_context>

<pallas_src>
import jax
import jax.numpy as jnp
from jax.experimental import pallas as pl
from jax.experimental.pallas import tpu as pltpu


def frontend_kernel(x_ref, w_ref, posb_ref, o_ref):
    # x_ref:    (TB, TS, F_in)  compute dtype (bf16) -- current batch x row tile
    # w_ref:    (F_in, D_pad)   compute dtype        -- resident embed weight (transposed)
    # posb_ref: (TS, D_pad)     f32                  -- positional rows with bias folded in
    # o_ref:    (TB, TS, D_pad) output dtype
    tb, ts, f_in = x_ref.shape
    d_pad = o_ref.shape[-1]
    # Collapse (TB, TS) -> rows: one large MXU matmul per grid step. TS is either the
    # full S or a multiple of 8, so this leading-dim collapse is layout-trivial.
    x2d = x_ref[...].reshape(tb * ts, f_in)
    y = jnp.dot(x2d, w_ref[...], preferred_element_type=jnp.float32)  # MXU, f32 acc
    y = y.reshape(tb, ts, d_pad) + posb_ref[...][None, :, :]
    o_ref[...] = y.astype(o_ref.dtype)


def transformer_frontend(x, w_t, b, pos_table, *, block_rows=512,
                         compute_dtype=jnp.bfloat16):
    """TransformerFrontend forward.

    x:         (B, S, F_in)
    w_t:       (F_in, D)     embed weight, pre-transposed vs torch's (D, F_in)
    b:         (D,)          embed bias
    pos_table: (max_len, D)  learned positional embedding table
    returns    (B, S, D) in x.dtype
    """
    B, S, F_in = x.shape
    D = w_t.shape[1]
    if S > pos_table.shape[0]:
        raise ValueError(
            f"sequence length {S} exceeds positional table size {pos_table.shape[0]}")

    out_dtype = x.dtype

    # Lane-dense output: pad the model dim up to a multiple of 128.
    D_pad = ((D + 127) // 128) * 128
    pad = D_pad - D

    # Fold bias into the positional rows (one tiny wrapper-side XLA op); keep f32.
    pos_b = pos_table[:S].astype(jnp.float32) + b.astype(jnp.float32)[None, :]
    w_c = w_t
    if pad:
        w_c = jnp.pad(w_c, ((0, 0), (0, pad)))
        pos_b = jnp.pad(pos_b, ((0, 0), (0, pad)))

    # bf16 matmul operands (halves HBM read traffic; f32 accumulation in-kernel).
    x_c = x.astype(compute_dtype)
    w_c = w_c.astype(compute_dtype)

    # Tile selection: target ~block_rows rows per grid step.
    target = max(8, (block_rows // 8) * 8)
    if S >= target:
        TS, TB = target, 1
    else:
        TS = S
        # Pack multiple batch elements per step only when the in-kernel leading-dim
        # collapse stays sublane-aligned (S multiple of 8).
        TB = min(B, max(1, target // S)) if (S % 8 == 0) else 1
    n_b = pl.cdiv(B, TB)
    n_s = pl.cdiv(S, TS)

    csize = jnp.dtype(compute_dtype).itemsize
    osize = jnp.dtype(out_dtype).itemsize
    rows = TB * TS
    # Double-buffered x / pos / out tiles + resident weight + f32 intermediate, with headroom.
    vmem_est = (2 * rows * F_in * csize + 2 * F_in * D_pad * csize
                + 2 * TS * D_pad * 4 + 2 * rows * D_pad * osize
                + rows * D_pad * 4)
    vmem_limit = int(min(max(2 * vmem_est, 16 * 1024 * 1024), 64 * 1024 * 1024))

    cost = pl.CostEstimate(
        flops=2 * B * S * F_in * D_pad,
        transcendentals=0,
        bytes_accessed=(B * S * F_in * csize + F_in * D_pad * csize
                        + S * D_pad * 4 + B * S * D_pad * osize),
    )

    out = pl.pallas_call(
        frontend_kernel,
        out_shape=jax.ShapeDtypeStruct((B, S, D_pad), out_dtype),
        grid=(n_b, n_s),
        in_specs=[
            pl.BlockSpec((TB, TS, F_in), lambda bi, si: (bi, si, 0)),  # x tile
            pl.BlockSpec((F_in, D_pad), lambda bi, si: (0, 0)),        # resident weight
            pl.BlockSpec((TS, D_pad), lambda bi, si: (si, 0)),         # pos+bias rows
        ],
        out_specs=pl.BlockSpec((TB, TS, D_pad), lambda bi, si: (bi, si, 0)),
        compiler_params=pltpu.CompilerParams(
            dimension_semantics=("parallel", "parallel"),
            vmem_limit_bytes=vmem_limit,
        ),
        cost_estimate=cost,
    )(x_c, w_c, pos_b)

    if pad:
        out = out[:, :, :D]
    return out
    # TODO(synk): dropout_p > 0.0 path (stochastic) omitted; module registers dropout=None for p=0.


if __name__ == "__main__":
    # Small shapes consistent with the module: batch=2, seq=8, in_features=16, model_dim=32
    B, S, F_in, D = 2, 8, 16, 32
    MAX_LEN = 64
    INIT_STD = 0.02

    key = jax.random.PRNGKey(0)
    k_x, k_w, k_pos = jax.random.split(key, 3)

    x = jax.random.normal(k_x, (B, S, F_in), dtype=jnp.float32)

    # init_weights(): normal(0, 0.02) for embed.weight and pos_encoder.weight, zeros for bias.
    # torch Linear weight shape is (D, F_in); kernel takes it pre-transposed as (F_in, D).
    w_t = INIT_STD * jax.random.normal(k_w, (F_in, D), dtype=jnp.float32)
    b = jnp.zeros((D,), dtype=jnp.float32)
    pos_table = INIT_STD * jax.random.normal(k_pos, (MAX_LEN, D), dtype=jnp.float32)

    out = transformer_frontend(x, w_t, b, pos_table)
    out = jax.block_until_ready(out)

    assert out.shape == (B, S, D)
    assert out.dtype == x.dtype

    # Reference matching the kernel's bf16-matmul / f32-accumulate precision.
    ref_bf16 = jnp.einsum("bsf,fd->bsd",
                          x.astype(jnp.bfloat16), w_t.astype(jnp.bfloat16),
                          preferred_element_type=jnp.float32)
    ref_bf16 = ref_bf16 + b[None, None, :] + pos_table[:S][None, :, :]
    assert jnp.allclose(out, ref_bf16, atol=1e-3, rtol=1e-3)

    # Coarse check against the full-f32 reference (bf16 input quantization tolerance).
    ref_f32 = x @ w_t + b[None, None, :] + pos_table[:S][None, :, :]
    assert jnp.allclose(out, ref_f32, atol=2e-2, rtol=2e-2)

    print("KERNEL_OK")
</pallas_src>

<mosaic_0001>
module attributes {stable_mosaic.version = 11 : i64} {
  func.func @frontend_kernel(%arg0: i32, %arg1: i32, %arg2: memref<2x8x16xbf16, #tpu.memory_space<vmem>>, %arg3: memref<16x128xbf16, #tpu.memory_space<vmem>>, %arg4: memref<8x128xf32, #tpu.memory_space<vmem>>, %arg5: memref<2x8x128xf32, #tpu.memory_space<vmem>>) attributes {dimension_semantics = [#tpu.dimension_semantics<parallel>, #tpu.dimension_semantics<parallel>], iteration_bounds = array<i64: 1, 1>, scalar_prefetch = 0 : i64, scratch_operands = 0 : i64, tpu.core_type = #tpu.core_type<tc>, window_params = [{transform_indices = @transform_0, window_bounds = array<i64: 2, 8, 16>}, {pipeline_mode = #tpu.pipeline_mode<synchronous>, transform_indices = @transform_1, window_bounds = array<i64: 16, 128>}, {transform_indices = @transform_2, window_bounds = array<i64: 8, 128>}, {transform_indices = @transform_3, window_bounds = array<i64: 2, 8, 128>}]} {
    %c0 = arith.constant 0 : index
    %c0_0 = arith.constant 0 : index
    %c0_1 = arith.constant 0 : index
    %0 = vector.load %arg2[%c0, %c0_0, %c0_1] : memref<2x8x16xbf16, #tpu.memory_space<vmem>>, vector<2x8x16xbf16>
    %1 = vector.shape_cast %0 : vector<2x8x16xbf16> to vector<16x16xbf16>
    %c0_2 = arith.constant 0 : index
    %c0_3 = arith.constant 0 : index
    %2 = vector.load %arg3[%c0_2, %c0_3] : memref<16x128xbf16, #tpu.memory_space<vmem>>, vector<16x128xbf16>
    %cst = arith.constant dense<0.000000e+00> : vector<16x128xf32>
    %3 = tpu.matmul %1, %2, %cst {dimension_numbers = #tpu.dot_dimension_numbers<[1], [0], [0], [1], [0, 0, 1, 1], [], []>} : vector<16x16xbf16>, vector<16x128xbf16>, vector<16x128xf32> -> vector<16x128xf32>
    %4 = vector.shape_cast %3 : vector<16x128xf32> to vector<2x8x128xf32>
    %c0_4 = arith.constant 0 : index
    %c0_5 = arith.constant 0 : index
    %5 = vector.load %arg4[%c0_4, %c0_5] : memref<8x128xf32, #tpu.memory_space<vmem>>, vector<8x128xf32>
    %6 = vector.shape_cast %5 : vector<8x128xf32> to vector<1x8x128xf32>
    %7 = vector.broadcast %6 : vector<1x8x128xf32> to vector<2x8x128xf32>
    %8 = arith.addf %4, %7 : vector<2x8x128xf32>
    %c0_6 = arith.constant 0 : index
    %c0_7 = arith.constant 0 : index
    %c0_8 = arith.constant 0 : index
    %9 = vector.load %arg5[%c0_6, %c0_7, %c0_8] : memref<2x8x128xf32, #tpu.memory_space<vmem>>, vector<2x8x128xf32>
    tpu.vector_store %arg5[%c0_6, %c0_7, %c0_8], %8 {strides = array<i32>} : memref<2x8x128xf32, #tpu.memory_space<vmem>>, vector<2x8x128xf32>,
    return
  }
  func.func @transform_0(%arg0: i32, %arg1: i32) -> (i32, i32, i32) {
    %c0_i32 = arith.constant 0 : i32
    %c0_i32_0 = arith.constant 0 : i32
    return %arg0, %arg1, %c0_i32 : i32, i32, i32
  }
  func.func @transform_1(%arg0: i32, %arg1: i32) -> (i32, i32) {
    %c0_i32 = arith.constant 0 : i32
    %c0_i32_0 = arith.constant 0 : i32
    %c0_i32_1 = arith.constant 0 : i32
    return %c0_i32, %c0_i32_0 : i32, i32
  }
  func.func @transform_2(%arg0: i32, %arg1: i32) -> (i32, i32) {
    %c0_i32 = arith.constant 0 : i32
    %c0_i32_0 = arith.constant 0 : i32
    return %arg1, %c0_i32 : i32, i32
  }
  func.func @transform_3(%arg0: i32, %arg1: i32) -> (i32, i32, i32) {
    %c0_i32 = arith.constant 0 : i32
    %c0_i32_0 = arith.constant 0 : i32
    return %arg0, %arg1, %c0_i32 : i32, i32, i32
  }
}

</mosaic_0001>

<llo_original>
// kernel: tpu_custom_call.1
$region0: #{tpu_custom_call.1}
  #allocation0 [shape = 'u32[]', space=smem, size = 0x4, offset = 0x4, fixed_abs, tag = 'smem constant byte address 0x4 - core index']
  #allocation1 [shape = 'u32[144,128]{1,0:T(1,128)}', space=vmem, size = 0x12000, scoped, tag = 'internal scratch']
  %s0 = inlined_call_operand.hbm [shape: bf16[2,8,16], index: 0, kind: input, shape index: {}]
  %s1 = inlined_call_operand.hbm [shape: bf16[16,128], index: 1, kind: input, shape index: {}]
  %s2 = inlined_call_operand.hbm [shape: f32[8,128], index: 2, kind: input, shape index: {}]
  %s3 = inlined_call_operand.hbm [shape: f32[2,8,128], index: 3, kind: output, shape index: {}]
  %s4 = sld [smem:[#allocation0]]
  $region34: #{tpu_custom_call.1} parent=0
    _
  %s6 = ssub.s32 1, %s4
  %s7 = scalar_select 0, %s6, %s4
  $region1: #{tpu_custom_call.1} parent=0
    #allocation2 [shape = 'u8[4096]{0}', space=vmem, size = 0x1000, scoped, tag = 'input window, operand 0, single buffered']
    #allocation3 [shape = 's32[1]{0}', space=sflag, size = 0x4, scoped, tag = 'scoped memory for tpu_custom_call.1']
    #allocation4 [shape = 's32[1]{0}', space=sflag, size = 0x4, scoped, tag = 'scoped memory for tpu_custom_call.1']
    #allocation5 [shape = 'u8[4096]{0}', space=vmem, size = 0x1000, scoped, tag = 'input window, operand 1, single buffered']
    #allocation6 [shape = 's32[1]{0}', space=sflag, size = 0x4, scoped, tag = 'scoped memory for tpu_custom_call.1']
    #allocation7 [shape = 'u8[4096]{0}', space=vmem, size = 0x1000, scoped, tag = 'input window, operand 2, single buffered']
    #allocation8 [shape = 'u8[8192]{0}', space=vmem, size = 0x2000, scoped, tag = 'output window, operand 0, single buffered']
    %8 = vsyncpa [#allocation3], 0
    %9 = vsyncpa [#allocation6], 0
    %10 = vsyncpa [#allocation4], 0
    // Predicated region
    $region2: #{tpu_custom_call.1} parent=1 // pred_check
      _
    $region3: #{tpu_custom_call.1} parent=1 // pred_check_branch
      %12 = sbr.rel (0) target = $region5
    $region4: #{tpu_custom_call.1} parent=1 // pred_region
      %s14 = ssub.s32 128, 128
      %15 = vsyncadd [#allocation3], %s14
      %s16 = sshll.u32 [#allocation2], 4
      %s17 = int_to_ptr.vmem [resolvable:$true] %s16
      %22 = dma.hbm_to_vmem [thread:$0]  %s0, 128, %s17, [#allocation3], 64, 64, 4
    $region5: #{tpu_custom_call.1} parent=1 // pred_fallthru
      _
    // Predicated region
    $region6: #{tpu_custom_call.1} parent=1 // pred_check
      _
    $region7: #{tpu_custom_call.1} parent=1 // pred_check_branch
      %24 = sbr.rel (0) target = $region9
    $region8: #{tpu_custom_call.1} parent=1 // pred_region
      %s26 = ssub.s32 128, 128
      %27 = vsyncadd [#allocation6], %s26
      %s28 = sshll.u32 [#allocation5], 4
      %s29 = int_to_ptr.vmem [resolvable:$true] %s28
      %34 = dma.hbm_to_vmem [thread:$0]  %s1, 128, %s29, [#allocation6], 64, 64, 4
    $region9: #{tpu_custom_call.1} parent=1 // pred_fallthru
      _
    // Predicated region
    $region10: #{tpu_custom_call.1} parent=1 // pred_check
      _
    $region11: #{tpu_custom_call.1} parent=1 // pred_check_branch
      %36 = sbr.rel (0) target = $region13
    $region12: #{tpu_custom_call.1} parent=1 // pred_region
      %s38 = ssub.s32 128, 128
      %39 = vsyncadd [#allocation6], %s38
      %s41 = sshll.u32 [#allocation7], 4
      %s42 = int_to_ptr.vmem [resolvable:$true] %s41
      %44 = dma.hbm_to_vmem [thread:$0]  %s2, 128, %s42, [#allocation6]
    $region13: #{tpu_custom_call.1} parent=1 // pred_fallthru
      _
    // Predicated region
    $region14: #{tpu_custom_call.1} parent=1 // pred_check
      _
    $region15: #{tpu_custom_call.1} parent=1 // pred_check_branch
      %46 = sbr.rel (0) target = $region17
    $region16: #{tpu_custom_call.1} parent=1 // pred_region
      %47 = dma.done [#allocation3], 128
    $region17: #{tpu_custom_call.1} parent=1 // pred_fallthru
      _
    // Predicated region
    $region18: #{tpu_custom_call.1} parent=1 // pred_check
      _
    $region19: #{tpu_custom_call.1} parent=1 // pred_check_branch
      %49 = sbr.rel (0) target = $region21
    $region20: #{tpu_custom_call.1} parent=1 // pred_region
      %50 = dma.done [#allocation6], 128
    $region21: #{tpu_custom_call.1} parent=1 // pred_fallthru
      _
    // Predicated region
    $region22: #{tpu_custom_call.1} parent=1 // pred_check
      _
    $region23: #{tpu_custom_call.1} parent=1 // pred_check_branch
      %52 = sbr.rel (0) target = $region25
    $region24: #{tpu_custom_call.1} parent=1 // pred_region
      %53 = dma.done [#allocation6], 128
    $region25: #{tpu_custom_call.1} parent=1 // pred_fallthru
      _
    %v55 = vld [vmem:[#allocation2] sm:$0xf]
    %v56 = vld [vmem:[#allocation2 + $0x4] sm:$0xf]
    %v57 = vld [vmem:[#allocation5] sm:$0xf]
    %v58 = vld [vmem:[#allocation5 + $0x4] sm:$0xf]
    %v61 = vunpack.c.l.b16 %v55
    %v62 = vunpack.c.l.b16 %v56
    %v63 = vpack.c.b16 %v62, %v61
    %v66 = vunpack.c.l.b16 %v57
    %v67 = vunpack.c.l.b16 %v58
    %v68 = vpack.c.b16 %v67, %v66
    %vm70 = vcmask 130048
    %v72 = vsel %vm70, %v63, 0
    %74 = vmatprep.subr.bf16.mxu0 0
    %75 = vmatpush1.bf16.msra.mxu0 0
    %76 = vmatprep.subr.bf16.mxu0 0
    %77 = vmatpush1.bf16.msra.mxu0 0
    %78 = vmatprep.subr.bf16.mxu0 0
    %79 = vmatpush1.bf16.msra.mxu0 0
    %80 = vmatprep.subr.bf16.mxu0 0
    %81 = vmatpush1.bf16.msra.mxu0 0
    %82 = vmatprep.subr.bf16.mxu0 0
    %83 = vmatpush1.bf16.msra.mxu0 0
    %84 = vmatprep.subr.bf16.mxu0 0
    %85 = vmatpush1.bf16.msra.mxu0 0
    %86 = vmatprep.subr.bf16.mxu0 0
    %87 = vmatpush1.bf16.msra.mxu0 0
    %88 = vmatprep.subr.bf16.mxu0 0
    %89 = vmatpush1.bf16.msra.mxu0 %v68
    %90 = vmatprep.subr.bf16.mxu0 0
    %91 = vmatpush2.bf16.msra.mxu0 0
    %92 = vmatprep.subr.bf16.mxu0 0
    %93 = vmatpush2.bf16.msra.mxu0 0
    %94 = vmatprep.subr.bf16.mxu0 0
    %95 = vmatpush2.bf16.msra.mxu0 0
    %96 = vmatprep.subr.bf16.mxu0 0
    %97 = vmatpush2.bf16.msra.mxu0 0
    %98 = vmatprep.subr.bf16.mxu0 0
    %99 = vmatpush2.bf16.msra.mxu0 0
    %100 = vmatprep.subr.bf16.mxu0 0
    %101 = vmatpush2.bf16.msra.mxu0 0
    %102 = vmatprep.subr.bf16.mxu0 0
    %103 = vmatpush2.bf16.msra.mxu0 0
    %104 = vmatprep.subr.bf16.mxu0 0
    %105 = vmatpush2.bf16.msra.mxu0 0
    %106 = vmatprep.mubr.bf16.mxu0 0
    %107 = vmatmul.mubr.bf16.gmra.mxu0 %v72
    %v108 = vpop.f32.mrf.mxu0
    %v109 = vadd.f32 0.0, %v108
    %v110 = vpop.f32.mrf.mxu0
    %v111 = vpop.f32.mrf.mxu0
    %v112 = vadd.f32 0.0, %v111
    %v113 = vpop.f32.mrf.mxu0
    %114 = vdwg.mxu0
    %v115 = vld [vmem:[#allocation7] sm:$0xff]
    %v116 = vadd.f32 %v109, %v115
    %v117 = vadd.f32 %v112, %v115
    %118 = vst [vmem:[#allocation8] sm:$0xff] %v116
    %119 = vst [vmem:[#allocation8 + $0x8] sm:$0xff] %v117
    // Predicated region
    $region26: #{tpu_custom_call.1} parent=1 // pred_check
      _
    $region27: #{tpu_custom_call.1} parent=1 // pred_check_branch
      %121 = sbr.rel (0) target = $region29
    $region28: #{tpu_custom_call.1} parent=1 // pred_region
      %s123 = ssub.s32 256, 256
      %124 = vsyncadd [#allocation4], %s123
      %s125 = sshll.u32 [#allocation8], 4
      %s126 = int_to_ptr.vmem [resolvable:$true] %s125
      %131 = dma.vmem_to_hbm [thread:$0]  %s126, 256, %s3, [#allocation4], 128, 128, 8
    $region29: #{tpu_custom_call.1} parent=1 // pred_fallthru
      _
    // Predicated region
    $region30: #{tpu_custom_call.1} parent=1 // pred_check
      _
    $region31: #{tpu_custom_call.1} parent=1 // pred_check_branch
      %133 = sbr.rel (0) target = $region33
    $region32: #{tpu_custom_call.1} parent=1 // pred_region
      %134 = dma.done [#allocation4], 256
    $region33: #{tpu_custom_call.1} parent=1 // pred_fallthru
      _
    %135 = vsyncpa [#allocation3], 1
    %136 = vsyncpa [#allocation6], 1
    %137 = vsyncpa [#allocation4], 1

</llo_original>
